<compile_context>
chip_gen: v7x
topology: tpu7x:2x2x1
jax: 0.10.0
libtpu: 0.0.40
codegen_flags: <defaults>
</compile_context>

<pallas_src>
import functools

import jax
import jax.numpy as jnp
from jax.experimental import pallas as pl
from jax.experimental.pallas import tpu as pltpu

LANES = 128
MAX_TM = 4096          # rows per tile: 2 MiB f32 logits + 1 MiB bf16 targets / buffer
MIN_SPLIT_ROWS = 2048  # above this, force >= 2 (even) tiles for v7x megacore


def _round_up(a, m):
    return -(-a // m) * m


def _cdiv(a, b):
    return -(-a // b)


def _focal_loss_kernel(x_ref, t_ref, out_ref, *, alpha, gamma,
                       full_rows, rem_lanes, mask_last, single_tile):
    """One grid step: focal loss on a (TM, 128) tile -> (8, 128) partial sum."""
    x = x_ref[...].astype(jnp.float32)
    t = t_ref[...].astype(jnp.float32)
    tm, lanes = x.shape  # static block shape; tm is a multiple of 16

    # BCEWithLogitsLoss(reduction='none'), numerically stable form (matches
    # PyTorch): max(x, 0) - x*t + log1p(exp(-|x|))
    bce = jnp.maximum(x, 0.0) - x * t + jnp.log1p(jnp.exp(-jnp.abs(x)))
    # NOTE: omp = -jnp.expm1(-bce) would shave one VALU op (perf review); exp is
    # kept because its Mosaic lowering is guaranteed and the EUP push dominates.
    pt = jnp.exp(-bce)
    omp = 1.0 - pt

    # (1 - pt) ** gamma without the exp(log) pow path for small integer gamma.
    if gamma == 2.0:
        mod = omp * omp
    elif gamma == 1.0:
        mod = omp
    elif float(gamma) == int(gamma) and int(gamma) >= 0:
        mod = omp ** int(gamma)
    else:
        mod = omp ** gamma

    focal = mod * bce
    if alpha != 1.0:
        focal = alpha * focal

    def _store(v):
        # Reduce across vregs only (VPU adds, no XLU in the hot loop).
        out_ref[0] = v.reshape(tm // 8, 8, lanes).sum(axis=0)

    if not mask_last:
        # Exact tiling: no masking anywhere.
        _store(focal)
        return

    def _masked_store():
        # Only the last tile can see lane padding (wrapper zeros) or block-
        # boundary padding (garbage).  Row-level compare is int32-safe for any
        # realistic n (no row*128+col product that overflows past 2**31 elems).
        i = pl.program_id(0)
        grow = jax.lax.broadcasted_iota(jnp.int32, (tm, lanes), 0) + i * tm
        valid = grow < full_rows
        if rem_lanes:
            col = jax.lax.broadcasted_iota(jnp.int32, (tm, lanes), 1)
            valid = valid | ((grow == full_rows) & (col < rem_lanes))
        _store(jnp.where(valid, focal, 0.0))

    if single_tile:
        _masked_store()
    else:
        last = pl.num_programs(0) - 1

        @pl.when(pl.program_id(0) < last)
        def _():
            _store(focal)

        @pl.when(pl.program_id(0) == last)
        def _():
            _masked_store()


def focal_loss(inputs, targets, alpha=1.0, gamma=2.0, reduction="mean"):
    """Pallas implementation of FocalLoss.forward (reduction='mean' or 'sum').

    inputs, targets: arrays of identical shape (any rank); logits / {0,1} masks.
    Returns a scalar float32.
    """
    # TODO(synk): reduction='none' (full per-element loss tensor) not implemented.
    assert inputs.shape == targets.shape
    assert reduction in ("mean", "sum")
    n = int(inputs.size)
    assert n > 0

    x = inputs.reshape(-1)
    t = targets.reshape(-1)

    # Narrow the {0,1} target mask to bf16: exact for binary targets, halves
    # the targets' HBM read traffic (direct win on bandwidth-bound v5e/v6e).
    if t.dtype == jnp.float32:
        t = t.astype(jnp.bfloat16)

    rows = _cdiv(n, LANES)

    # Row-tile selection: always a multiple of 16 so f32 (8,128) and bf16
    # (16,128) layouts are both native and the in-kernel reshape-reduce holds.
    if rows <= MIN_SPLIT_ROWS:
        tm = _round_up(rows, 16)
        num_tiles = 1
        rows_alloc = tm          # physically pad the (tiny) array to one tile
    else:
        nt = max(2, _cdiv(rows, MAX_TM))
        if nt % 2:
            nt += 1              # even tile count -> both v7x TensorCores busy
        tm = min(MAX_TM, _round_up(_cdiv(rows, nt), 16))
        num_tiles = _cdiv(rows, tm)
        rows_alloc = rows        # ragged last tile handled by block padding

    alloc = rows_alloc * LANES
    if alloc != n:
        # <= 127 lane-pad elements (plus <= 15 rows for tiny inputs); padded
        # values never reach the sum (masked on the last tile).
        x = jnp.pad(x, (0, alloc - n))
        t = jnp.pad(t, (0, alloc - n))

    x2 = x.reshape(rows_alloc, LANES)
    t2 = t.reshape(rows_alloc, LANES)

    # Masking is only needed on the last tile, and only if the grid does not
    # cover exactly n elements.
    mask_last = (num_tiles * tm * LANES != n)

    kernel = functools.partial(
        _focal_loss_kernel,
        alpha=float(alpha),
        gamma=float(gamma),
        full_rows=n // LANES,
        rem_lanes=n % LANES,
        mask_last=mask_last,
        single_tile=(num_tiles == 1),
    )

    # 2 inputs x 2 pipeline buffers x tile + headroom; 16 MiB floor stays within
    # every generation's default scoped VMEM (v5e 16 MiB), 48 MiB cap stays
    # under v7x's 64 MiB physical VMEM.
    tile_bytes = tm * LANES * (x2.dtype.itemsize + t2.dtype.itemsize)
    vmem_limit = min(max(2 * tile_bytes + (4 << 20), 16 << 20), 48 << 20)

    partials = pl.pallas_call(
        kernel,
        out_shape=jax.ShapeDtypeStruct((num_tiles, 8, LANES), jnp.float32),
        grid_spec=pltpu.PrefetchScalarGridSpec(
            num_scalar_prefetch=0,
            grid=(num_tiles,),
            in_specs=[
                pl.BlockSpec((tm, LANES), lambda i: (i, 0)),
                pl.BlockSpec((tm, LANES), lambda i: (i, 0)),
            ],
            out_specs=pl.BlockSpec((1, 8, LANES), lambda i: (i, 0, 0)),
        ),
        compiler_params=pltpu.CompilerParams(
            dimension_semantics=("parallel",),
            vmem_limit_bytes=int(vmem_limit),
        ),
    )(x2, t2)

    # Tiny cross-tile reduction + mean in plain JAX (negligible vs. the stream).
    total = jnp.sum(partials)
    if reduction == "sum":
        return total
    return total / jnp.float32(n)


def _focal_loss_ref(inputs, targets, alpha=1.0, gamma=2.0):
    """Plain-JAX reference (mirrors the PyTorch module)."""
    x = inputs.astype(jnp.float32)
    t = targets.astype(jnp.float32)
    bce = jnp.maximum(x, 0.0) - x * t + jnp.log1p(jnp.exp(-jnp.abs(x)))
    pt = jnp.exp(-bce)
    fl = alpha * (1.0 - pt) ** gamma * bce
    return jnp.mean(fl)


if __name__ == "__main__":
    key = jax.random.PRNGKey(0)
    k1, k2 = jax.random.split(key)

    # Shapes consistent with a segmentation-style use: NCHW logits + 0/1 targets.
    B, C, H, W = 2, 4, 16, 16
    inputs = jax.random.normal(k1, (B, C, H, W), dtype=jnp.float32) * 2.0
    targets = (jax.random.uniform(k2, (B, C, H, W)) > 0.5).astype(jnp.float32)

    loss = focal_loss(inputs, targets, alpha=1.0, gamma=2.0)
    loss = jax.block_until_ready(loss)

    ref = _focal_loss_ref(inputs, targets, alpha=1.0, gamma=2.0)
    assert jnp.allclose(loss, ref, rtol=1e-5, atol=1e-6), (loss, ref)

    print("KERNEL_OK")
</pallas_src>

<mosaic_0001>
module attributes {stable_mosaic.version = 11 : i64} {
  func.func @_focal_loss_kernel(%arg0: i32, %arg1: memref<16x128xf32, #tpu.memory_space<vmem>>, %arg2: memref<16x128xbf16, #tpu.memory_space<vmem>>, %arg3: memref<1x8x128xf32, #tpu.memory_space<vmem>>) attributes {dimension_semantics = [#tpu.dimension_semantics<parallel>], iteration_bounds = array<i64: 1>, scalar_prefetch = 0 : i64, scratch_operands = 0 : i64, tpu.core_type = #tpu.core_type<tc>, window_params = [{transform_indices = @transform_0, window_bounds = array<i64: 16, 128>}, {transform_indices = @transform_1, window_bounds = array<i64: 16, 128>}, {transform_indices = @transform_2, window_bounds = array<i64: 1, 8, 128>}]} {
    %c0 = arith.constant 0 : index
    %c0_0 = arith.constant 0 : index
    %0 = vector.load %arg1[%c0, %c0_0] : memref<16x128xf32, #tpu.memory_space<vmem>>, vector<16x128xf32>
    %c0_1 = arith.constant 0 : index
    %c0_2 = arith.constant 0 : index
    %1 = vector.load %arg2[%c0_1, %c0_2] : memref<16x128xbf16, #tpu.memory_space<vmem>>, vector<16x128xbf16>
    %2 = arith.extf %1 : vector<16x128xbf16> to vector<16x128xf32>
    %cst = arith.constant 0.000000e+00 : f32
    %3 = vector.broadcast %cst : f32 to vector<16x128xf32>
    %4 = arith.maximumf %0, %3 : vector<16x128xf32>
    %5 = arith.mulf %0, %2 : vector<16x128xf32>
    %6 = arith.subf %4, %5 : vector<16x128xf32>
    %7 = math.absf %0 : vector<16x128xf32>
    %cst_3 = arith.constant 0.000000e+00 : f32
    %8 = vector.broadcast %cst_3 : f32 to vector<16x128xf32>
    %9 = arith.subf %8, %7 : vector<16x128xf32>
    %10 = math.exp %9 : vector<16x128xf32>
    %11 = math.log1p %10 : vector<16x128xf32>
    %12 = arith.addf %6, %11 : vector<16x128xf32>
    %cst_4 = arith.constant 0.000000e+00 : f32
    %13 = vector.broadcast %cst_4 : f32 to vector<16x128xf32>
    %14 = arith.subf %13, %12 : vector<16x128xf32>
    %15 = math.exp %14 : vector<16x128xf32>
    %cst_5 = arith.constant 1.000000e+00 : f32
    %16 = vector.broadcast %cst_5 : f32 to vector<16x128xf32>
    %17 = arith.subf %16, %15 : vector<16x128xf32>
    %18 = arith.mulf %17, %17 : vector<16x128xf32>
    %19 = arith.mulf %18, %12 : vector<16x128xf32>
    %20 = vector.shape_cast %19 : vector<16x128xf32> to vector<2x8x128xf32>
    %cst_6 = arith.constant dense<0.000000e+00> : vector<8x128xf32>
    %21 = vector.multi_reduction <add>, %20, %cst_6 [0] : vector<2x8x128xf32> to vector<8x128xf32>
    %c0_7 = arith.constant 0 : index
    %c0_8 = arith.constant 0 : index
    %c0_9 = arith.constant 0 : index
    %22 = vector.load %arg3[%c0_7, %c0_8, %c0_9] : memref<1x8x128xf32, #tpu.memory_space<vmem>>, vector<1x8x128xf32>
    %23 = vector.shape_cast %22 : vector<1x8x128xf32> to vector<8x128xf32>
    %24 = vector.shape_cast %21 : vector<8x128xf32> to vector<1x8x128xf32>
    tpu.vector_store %arg3[%c0_7, %c0_8, %c0_9], %24 {strides = array<i32>} : memref<1x8x128xf32, #tpu.memory_space<vmem>>, vector<1x8x128xf32>,
    return
  }
  func.func @transform_0(%arg0: i32) -> (i32, i32) {
    %c0_i32 = arith.constant 0 : i32
    %c0_i32_0 = arith.constant 0 : i32
    return %arg0, %c0_i32 : i32, i32
  }
  func.func @transform_1(%arg0: i32) -> (i32, i32) {
    %c0_i32 = arith.constant 0 : i32
    %c0_i32_0 = arith.constant 0 : i32
    return %arg0, %c0_i32 : i32, i32
  }
  func.func @transform_2(%arg0: i32) -> (i32, i32, i32) {
    %c0_i32 = arith.constant 0 : i32
    %c0_i32_0 = arith.constant 0 : i32
    %c0_i32_1 = arith.constant 0 : i32
    return %arg0, %c0_i32, %c0_i32_0 : i32, i32, i32
  }
}

</mosaic_0001>

<llo_original>
// kernel: tpu_custom_call.1
$region0: #{tpu_custom_call.1}
  #allocation0 [shape = 'u32[]', space=smem, size = 0x4, offset = 0x4, fixed_abs, tag = 'smem constant byte address 0x4 - core index']
  #allocation1 [shape = 'u32[144,128]{1,0:T(1,128)}', space=vmem, size = 0x12000, scoped, tag = 'internal scratch']
  %s0 = inlined_call_operand.hbm [shape: f32[16,128], index: 0, kind: input, shape index: {}]
  %s1 = inlined_call_operand.hbm [shape: bf16[16,128], index: 1, kind: input, shape index: {}]
  %s2 = inlined_call_operand.hbm [shape: f32[1,8,128], index: 2, kind: output, shape index: {}]
  %s3 = sld [smem:[#allocation0]]
  $region26: #{tpu_custom_call.1} parent=0
    _
  %s5 = ssub.s32 1, %s3
  %s6 = scalar_select 0, %s5, %s3
  $region1: #{tpu_custom_call.1} parent=0
    #allocation2 [shape = 'u8[8192]{0}', space=vmem, size = 0x2000, scoped, tag = 'input window, operand 0, single buffered']
    #allocation3 [shape = 's32[1]{0}', space=sflag, size = 0x4, scoped, tag = 'scoped memory for tpu_custom_call.1']
    #allocation4 [shape = 's32[1]{0}', space=sflag, size = 0x4, scoped, tag = 'scoped memory for tpu_custom_call.1']
    #allocation5 [shape = 'u8[4096]{0}', space=vmem, size = 0x1000, scoped, tag = 'input window, operand 1, single buffered']
    #allocation6 [shape = 's32[1]{0}', space=sflag, size = 0x4, scoped, tag = 'scoped memory for tpu_custom_call.1']
    #allocation7 [shape = 'u8[4096]{0}', space=vmem, size = 0x1000, scoped, tag = 'output window, operand 0, single buffered']
    %7 = vsyncpa [#allocation3], 0
    %8 = vsyncpa [#allocation6], 0
    %9 = vsyncpa [#allocation4], 0
    // Predicated region
    $region2: #{tpu_custom_call.1} parent=1 // pred_check
      _
    $region3: #{tpu_custom_call.1} parent=1 // pred_check_branch
      %11 = sbr.rel (0) target = $region5
    $region4: #{tpu_custom_call.1} parent=1 // pred_region
      %s13 = ssub.s32 256, 256
      %14 = vsyncadd [#allocation3], %s13
      %s15 = sshll.u32 [#allocation2], 4
      %s16 = int_to_ptr.vmem [resolvable:$true] %s15
      %21 = dma.hbm_to_vmem [thread:$0]  %s0, 256, %s16, [#allocation3], 128, 128, 8
    $region5: #{tpu_custom_call.1} parent=1 // pred_fallthru
      _
    // Predicated region
    $region6: #{tpu_custom_call.1} parent=1 // pred_check
      _
    $region7: #{tpu_custom_call.1} parent=1 // pred_check_branch
      %23 = sbr.rel (0) target = $region9
    $region8: #{tpu_custom_call.1} parent=1 // pred_region
      %s25 = ssub.s32 128, 128
      %26 = vsyncadd [#allocation6], %s25
      %s27 = sshll.u32 [#allocation5], 4
      %s28 = int_to_ptr.vmem [resolvable:$true] %s27
      %33 = dma.hbm_to_vmem [thread:$0]  %s1, 128, %s28, [#allocation6], 64, 64, 4
    $region9: #{tpu_custom_call.1} parent=1 // pred_fallthru
      _
    // Predicated region
    $region10: #{tpu_custom_call.1} parent=1 // pred_check
      _
    $region11: #{tpu_custom_call.1} parent=1 // pred_check_branch
      %35 = sbr.rel (0) target = $region13
    $region12: #{tpu_custom_call.1} parent=1 // pred_region
      %36 = dma.done [#allocation3], 256
    $region13: #{tpu_custom_call.1} parent=1 // pred_fallthru
      _
    // Predicated region
    $region14: #{tpu_custom_call.1} parent=1 // pred_check
      _
    $region15: #{tpu_custom_call.1} parent=1 // pred_check_branch
      %38 = sbr.rel (0) target = $region17
    $region16: #{tpu_custom_call.1} parent=1 // pred_region
      %39 = dma.done [#allocation6], 128
    $region17: #{tpu_custom_call.1} parent=1 // pred_fallthru
      _
    %v40 = vld [vmem:[#allocation2] sm:$0xff]
    %v41 = vld [vmem:[#allocation2 + $0x8] sm:$0xff]
    %v42 = vld [vmem:[#allocation5] sm:$0xf]
    %v43 = vld [vmem:[#allocation5 + $0x4] sm:$0xf]
    %v44 = vunpack.c.l.bf16 %v42
    %v45 = vunpack.c.l.bf16 %v43
    %v46 = vmax.f32 %v40, 0.0
    %v47 = vmax.f32 %v41, 0.0
    %v48 = vmul.f32 %v40, %v44
    %v49 = vmul.f32 %v41, %v45
    %v50 = vsub.f32 %v46, %v48
    %v51 = vsub.f32 %v47, %v49
    %v52 = vand.u32 2147483647, %v40
    %v53 = vand.u32 2147483647, %v41
    %v54 = vsub.f32 0.0, %v52
    %v55 = vsub.f32 0.0, %v53
    %v56 = vmul.f32 %v54, 1.442695
    %v57 = vpow.pop %v56
    %v58 = vmul.f32 %v55, 1.442695
    %v59 = vpow.pop %v58
    %v60 = vadd.f32 %v57, 1.0
    %v61 = vlog2.pop %v60
    %v62 = vmul.f32 %v61, 0.6931472
    %v63 = vmul.f32 -0.5, %v57
    %v64 = vadd.f32 %v63, 1.0
    %v65 = vmul.f32 %v64, %v57
    %v66 = vand.u32 2147483647, %v57
    %vm67 = vcmp.lt.f32.partialorder %v66, 0.0004427343
    %v68 = vsel %vm67, %v65, %v62
    %v69 = vadd.f32 %v59, 1.0
    %v70 = vlog2.pop %v69
    %v71 = vmul.f32 %v70, 0.6931472
    %v72 = vmul.f32 -0.5, %v59
    %v73 = vadd.f32 %v72, 1.0
    %v74 = vmul.f32 %v73, %v59
    %v75 = vand.u32 2147483647, %v59
    %vm76 = vcmp.lt.f32.partialorder %v75, 0.0004427343
    %v77 = vsel %vm76, %v74, %v71
    %v78 = vadd.f32 %v50, %v68
    %v79 = vadd.f32 %v51, %v77
    %v80 = vsub.f32 0.0, %v78
    %v81 = vsub.f32 0.0, %v79
    %v82 = vmul.f32 %v80, 1.442695
    %v83 = vpow.pop %v82
    %v84 = vmul.f32 %v81, 1.442695
    %v85 = vpow.pop %v84
    %v86 = vsub.f32 1.0, %v83
    %v87 = vsub.f32 1.0, %v85
    %v88 = vmul.f32 %v86, %v86
    %v89 = vmul.f32 %v87, %v87
    %v90 = vmul.f32 %v88, %v78
    %v91 = vmul.f32 %v89, %v79
    %v92 = vadd.f32 %v90, %v91
    %93 = vst [vmem:[#allocation7] sm:$0xff] %v92
    // Predicated region
    $region18: #{tpu_custom_call.1} parent=1 // pred_check
      _
    $region19: #{tpu_custom_call.1} parent=1 // pred_check_branch
      %95 = sbr.rel (0) target = $region21
    $region20: #{tpu_custom_call.1} parent=1 // pred_region
      %s97 = ssub.s32 128, 128
      %98 = vsyncadd [#allocation4], %s97
      %s100 = sshll.u32 [#allocation7], 4
      %s101 = int_to_ptr.vmem [resolvable:$true] %s100
      %103 = dma.vmem_to_hbm [thread:$0]  %s101, 128, %s2, [#allocation4]
    $region21: #{tpu_custom_call.1} parent=1 // pred_fallthru
      _
    // Predicated region
    $region22: #{tpu_custom_call.1} parent=1 // pred_check
      _
    $region23: #{tpu_custom_call.1} parent=1 // pred_check_branch
      %105 = sbr.rel (0) target = $region25
    $region24: #{tpu_custom_call.1} parent=1 // pred_region
      %106 = dma.done [#allocation4], 128
    $region25: #{tpu_custom_call.1} parent=1 // pred_fallthru
      _
    %107 = vsyncpa [#allocation3], 1
    %108 = vsyncpa [#allocation6], 1
    %109 = vsyncpa [#allocation4], 1

</llo_original>
